<compile_context>
chip_gen: v6e
topology: v6e:2x2x1
jax: 0.10.0
libtpu: 0.0.40
codegen_flags: <defaults>
</compile_context>

<pallas_src>
import jax
import jax.numpy as jnp
from jax import lax
from jax.experimental import pallas as pl
from jax.experimental.pallas import tpu as pltpu

EPS = 1e-5
PAD = 128              # lane padding; widest layer is 3*dim (requires 3*dim <= 128)
GB_ROW = 4 * PAD       # row offset of packed gamma/beta rows inside the param block
PARAM_ROWS = 4 * PAD + 8
MAX_EVALS_PER_TILE = 32  # 32 evals * B=8 rows = 256 MXU rows (v6e/v7x MXU width)


def node_kernel(x_ref, p_ref, out_ref):
    """One eval-tile: x_ref (E, B, PAD); p_ref (520, PAD) packed params.

    E independent evals (each a full BN batch of B rows) are stacked along the
    leading axis so the MXU sees E*B rows per matmul, while train-mode
    BatchNorm statistics are computed per eval over its own B rows.
    """
    E, B, _ = x_ref.shape
    inv_b = 1.0 / B
    h = x_ref[...]                                            # (E, B, PAD) f32

    for layer in range(4):
        # Static views into the resident packed parameter block (zero-cost).
        w = p_ref[layer * PAD:(layer + 1) * PAD, :]           # (PAD, PAD)
        gamma = p_ref[GB_ROW + 2 * layer:GB_ROW + 2 * layer + 1, :]      # (1, PAD)
        beta = p_ref[GB_ROW + 2 * layer + 1:GB_ROW + 2 * layer + 2, :]   # (1, PAD)

        # All E*B rows share one weight -> a single dense MXU matmul.
        h2 = jnp.dot(h.reshape(E * B, PAD), w,
                     preferred_element_type=jnp.float32)
        h = h2.reshape(E, B, PAD)

        # Train-mode BatchNorm1d + ReLU, per eval.  Single cross-sublane
        # reduction per layer via the packed [h | h*h] view; biased batch
        # variance = E[h^2] - mean^2 (PyTorch train mode).
        hh = jnp.concatenate([h, h * h], axis=-1)             # (E, B, 2*PAD)
        s = jnp.sum(hh, axis=1, keepdims=True) * inv_b        # (E, 1, 2*PAD)
        mean = s[:, :, :PAD]
        var = s[:, :, PAD:] - mean * mean
        scale = gamma.reshape(1, 1, PAD) * lax.rsqrt(var + EPS)   # (E, 1, PAD)
        shift = beta.reshape(1, 1, PAD) - mean * scale
        h = jnp.maximum(h * scale + shift, 0.0)               # fused BN affine + ReLU

    out_ref[...] = h.astype(out_ref.dtype)


def init_node_params(dim, key):
    """PyTorch-faithful parameters: Linear uniform(-1/sqrt(fan_in), +), weights
    stored as (in, out); BatchNorm gamma=1, beta=0."""
    sizes = [(dim + 1, 2 * dim), (2 * dim, 3 * dim),
             (3 * dim, 2 * dim), (2 * dim, dim)]
    params = []
    for (fan_in, fan_out) in sizes:
        key, kw, kb = jax.random.split(key, 3)
        bound = 1.0 / jnp.sqrt(float(fan_in))
        w = jax.random.uniform(kw, (fan_in, fan_out), jnp.float32, -bound, bound)
        b = jax.random.uniform(kb, (1, fan_out), jnp.float32, -bound, bound)
        gamma = jnp.ones((1, fan_out), jnp.float32)
        beta = jnp.zeros((1, fan_out), jnp.float32)
        params.append((w, b, gamma, beta))
    return params


def pack_node_params(params, dim):
    """One-time prep: drop biases + the t row of W1 (both are batch-constant and
    cancel exactly under train-mode BN), pad every layer to 128 lanes and pack
    W1..W4 plus the 8 gamma/beta vectors into a single (520, 128) f32 block.
    Padded rows/columns are strictly zero (required so pad lanes stay zero)."""
    assert 3 * dim <= PAD, "widest layer (3*dim) must fit in one 128-lane block"
    (w1, _b1, g2, be2), (w2, _b2, g3, be3), \
        (w3, _b3, g4, be4), (w4, _b4, g5, be5) = params

    blk = jnp.zeros((PARAM_ROWS, PAD), jnp.float32)
    w1x = w1[1:, :]                                    # drop the t row
    blk = blk.at[0:w1x.shape[0], 0:w1x.shape[1]].set(w1x)
    blk = blk.at[PAD:PAD + w2.shape[0], 0:w2.shape[1]].set(w2)
    blk = blk.at[2 * PAD:2 * PAD + w3.shape[0], 0:w3.shape[1]].set(w3)
    blk = blk.at[3 * PAD:3 * PAD + w4.shape[0], 0:w4.shape[1]].set(w4)
    for i, v in enumerate([g2, be2, g3, be3, g4, be4, g5, be5]):
        v = v.reshape(-1)
        blk = blk.at[GB_ROW + i, :v.shape[0]].set(v)
    return blk


def node_forward_many(ts, xs, packed, *, evals_per_tile=MAX_EVALS_PER_TILE,
                      slice_output=True):
    """Fused forward for N independent evaluations (e.g. ODE-integrator steps or
    independent trajectories): one pallas_call, weights resident in VMEM.

    xs: (N, B, dim) f32.  BN statistics are computed per eval over its B rows
    (identical to calling the module N times).  `ts` is accepted for API parity
    but unused: t enters only through a batch-constant term that cancels under
    train-mode BatchNorm.
    """
    del ts
    N, B, dim = xs.shape
    E = min(evals_per_tile, N)
    n_tiles = pl.cdiv(N, E)
    Np = n_tiles * E

    # Lane-pad features to 128 and (if needed) pad N up to a tile multiple with
    # zero evals (harmless: they flow through as exact zeros).
    xp = jnp.zeros((Np, B, PAD), jnp.float32)
    xp = xp.at[:N, :, :dim].set(xs.astype(jnp.float32))

    out = pl.pallas_call(
        node_kernel,
        out_shape=jax.ShapeDtypeStruct((Np, B, PAD), jnp.float32),
        grid_spec=pltpu.PrefetchScalarGridSpec(
            num_scalar_prefetch=0,
            grid=(n_tiles,),
            in_specs=[
                # One eval-tile per grid step.
                pl.BlockSpec((E, B, PAD), lambda i: (i, 0, 0)),
                # Constant block index -> the packed params are fetched once
                # and stay resident in VMEM across the whole grid.
                pl.BlockSpec((PARAM_ROWS, PAD), lambda i: (0, 0)),
            ],
            out_specs=pl.BlockSpec((E, B, PAD), lambda i: (i, 0, 0)),
        ),
        compiler_params=pltpu.CompilerParams(
            # Eval-tiles are fully independent -> shard across v7x TensorCores.
            dimension_semantics=("parallel",)),
    )(xp, packed)

    if slice_output:
        return out[:N, :, :dim]
    # Hot-path option for an integrator loop: keep the padded (N, B, 128)
    # activations flowing (pad lanes are exactly zero) and slice once at the end.
    return out[:N]


def node_forward(t, x, packed):
    """Single module-faithful forward: x (B, dim) -> (B, dim)."""
    del t  # batch-constant contribution cancels under train-mode BN
    return node_forward_many(None, x[None], packed)[0]


def node_forward_ref(t, x, params):
    """Plain-JAX reference of the ORIGINAL module semantics (t concat, biases,
    two-pass batch statistics)."""
    B, dim = x.shape
    t_vec = jnp.ones((B, 1), x.dtype) * jnp.asarray(t, x.dtype)
    h = jnp.concatenate([t_vec, x], axis=1)
    for (w, b, gamma, beta) in params:
        h = h @ w + b
        mean = jnp.mean(h, axis=0, keepdims=True)
        var = jnp.mean((h - mean) ** 2, axis=0, keepdims=True)
        h = (h - mean) * lax.rsqrt(var + EPS) * gamma + beta
        h = jnp.maximum(h, 0.0)
    return h


if __name__ == "__main__":
    B, DIM = 8, 32
    key = jax.random.PRNGKey(0)
    k_x, k_p, k_many = jax.random.split(key, 3)

    params = init_node_params(DIM, k_p)
    packed = pack_node_params(params, DIM)

    # 1) Single forward, faithful to NODE.forward(t, x).
    x = jax.random.normal(k_x, (B, DIM), jnp.float32)
    t = 0.5
    out = jax.block_until_ready(node_forward(t, x, packed))
    ref = node_forward_ref(t, x, params)
    assert out.shape == (B, DIM), out.shape
    assert jnp.allclose(out, ref, atol=2e-4, rtol=2e-4), \
        float(jnp.max(jnp.abs(out - ref)))

    # 2) Fused multi-eval call (ODE-solver style): 64 independent evals in one
    #    pallas_call, params resident, 256-row MXU matmuls, per-eval BN stats.
    N = 64
    xs = jax.random.normal(k_many, (N, B, DIM), jnp.float32)
    ts = jnp.linspace(0.0, 1.0, N)
    outs = jax.block_until_ready(node_forward_many(ts, xs, packed))
    refs = jax.vmap(lambda tt, xx: node_forward_ref(tt, xx, params))(ts, xs)
    assert outs.shape == (N, B, DIM), outs.shape
    assert jnp.allclose(outs, refs, atol=2e-4, rtol=2e-4), \
        float(jnp.max(jnp.abs(outs - refs)))

    print("KERNEL_OK")
</pallas_src>

<mosaic_0001>
module attributes {stable_mosaic.version = 11 : i64} {
  func.func @node_kernel(%arg0: i32, %arg1: memref<1x8x128xf32, #tpu.memory_space<vmem>>, %arg2: memref<520x128xf32, #tpu.memory_space<vmem>>, %arg3: memref<1x8x128xf32, #tpu.memory_space<vmem>>) attributes {dimension_semantics = [#tpu.dimension_semantics<parallel>], iteration_bounds = array<i64: 1>, scalar_prefetch = 0 : i64, scratch_operands = 0 : i64, tpu.core_type = #tpu.core_type<tc>, window_params = [{transform_indices = @transform_0, window_bounds = array<i64: 1, 8, 128>}, {pipeline_mode = #tpu.pipeline_mode<synchronous>, transform_indices = @transform_1, window_bounds = array<i64: 520, 128>}, {transform_indices = @transform_2, window_bounds = array<i64: 1, 8, 128>}]} {
    %c0 = arith.constant 0 : index
    %c0_0 = arith.constant 0 : index
    %c0_1 = arith.constant 0 : index
    %0 = vector.load %arg1[%c0, %c0_0, %c0_1] : memref<1x8x128xf32, #tpu.memory_space<vmem>>, vector<1x8x128xf32>
    %c0_2 = arith.constant 0 : index
    %c0_3 = arith.constant 0 : index
    %1 = vector.load %arg2[%c0_2, %c0_3] : memref<520x128xf32, #tpu.memory_space<vmem>>, vector<128x128xf32>
    %c512 = arith.constant 512 : index
    %c0_4 = arith.constant 0 : index
    %2 = vector.load %arg2[%c512, %c0_4] : memref<520x128xf32, #tpu.memory_space<vmem>>, vector<1x128xf32>
    %c513 = arith.constant 513 : index
    %c0_5 = arith.constant 0 : index
    %3 = vector.load %arg2[%c513, %c0_5] : memref<520x128xf32, #tpu.memory_space<vmem>>, vector<1x128xf32>
    %4 = vector.shape_cast %0 : vector<1x8x128xf32> to vector<8x128xf32>
    %cst = arith.constant dense<0.000000e+00> : vector<8x128xf32>
    %5 = tpu.matmul %4, %1, %cst {dimension_numbers = #tpu.dot_dimension_numbers<[1], [0], [0], [1], [0, 0, 1, 1], [], []>} : vector<8x128xf32>, vector<128x128xf32>, vector<8x128xf32> -> vector<8x128xf32>
    %6 = vector.shape_cast %5 : vector<8x128xf32> to vector<1x8x128xf32>
    %7 = arith.mulf %6, %6 : vector<1x8x128xf32>
    %8 = tpu.concatenate %6, %7 in 2 : vector<1x8x128xf32>, vector<1x8x128xf32> -> vector<1x8x256xf32>
    %cst_6 = arith.constant dense<0.000000e+00> : vector<1x256xf32>
    %9 = vector.multi_reduction <add>, %8, %cst_6 [1] : vector<1x8x256xf32> to vector<1x256xf32>
    %10 = vector.shape_cast %9 : vector<1x256xf32> to vector<1x1x256xf32>
    %cst_7 = arith.constant 1.250000e-01 : f32
    %11 = vector.broadcast %cst_7 : f32 to vector<1x1x256xf32>
    %12 = arith.mulf %10, %11 : vector<1x1x256xf32>
    %13 = vector.extract_strided_slice %12 {offsets = [0, 0, 0], sizes = [1, 1, 128], strides = [1, 1, 1]} : vector<1x1x256xf32> to vector<1x1x128xf32>
    %14 = vector.extract_strided_slice %12 {offsets = [0, 0, 128], sizes = [1, 1, 128], strides = [1, 1, 1]} : vector<1x1x256xf32> to vector<1x1x128xf32>
    %15 = arith.mulf %13, %13 : vector<1x1x128xf32>
    %16 = arith.subf %14, %15 : vector<1x1x128xf32>
    %17 = vector.shape_cast %2 : vector<1x128xf32> to vector<1x1x128xf32>
    %cst_8 = arith.constant 9.99999974E-6 : f32
    %18 = vector.broadcast %cst_8 : f32 to vector<1x1x128xf32>
    %19 = arith.addf %16, %18 : vector<1x1x128xf32>
    %20 = math.rsqrt %19 : vector<1x1x128xf32>
    %21 = arith.mulf %17, %20 : vector<1x1x128xf32>
    %22 = vector.shape_cast %3 : vector<1x128xf32> to vector<1x1x128xf32>
    %23 = arith.mulf %13, %21 : vector<1x1x128xf32>
    %24 = arith.subf %22, %23 : vector<1x1x128xf32>
    %25 = vector.broadcast %21 : vector<1x1x128xf32> to vector<1x8x128xf32>
    %26 = arith.mulf %6, %25 : vector<1x8x128xf32>
    %27 = vector.broadcast %24 : vector<1x1x128xf32> to vector<1x8x128xf32>
    %28 = arith.addf %26, %27 : vector<1x8x128xf32>
    %cst_9 = arith.constant 0.000000e+00 : f32
    %29 = vector.broadcast %cst_9 : f32 to vector<1x8x128xf32>
    %30 = arith.maximumf %28, %29 : vector<1x8x128xf32>
    %c128 = arith.constant 128 : index
    %c0_10 = arith.constant 0 : index
    %31 = vector.load %arg2[%c128, %c0_10] : memref<520x128xf32, #tpu.memory_space<vmem>>, vector<128x128xf32>
    %c514 = arith.constant 514 : index
    %c0_11 = arith.constant 0 : index
    %32 = vector.load %arg2[%c514, %c0_11] : memref<520x128xf32, #tpu.memory_space<vmem>>, vector<1x128xf32>
    %c515 = arith.constant 515 : index
    %c0_12 = arith.constant 0 : index
    %33 = vector.load %arg2[%c515, %c0_12] : memref<520x128xf32, #tpu.memory_space<vmem>>, vector<1x128xf32>
    %34 = vector.shape_cast %30 : vector<1x8x128xf32> to vector<8x128xf32>
    %cst_13 = arith.constant dense<0.000000e+00> : vector<8x128xf32>
    %35 = tpu.matmul %34, %31, %cst_13 {dimension_numbers = #tpu.dot_dimension_numbers<[1], [0], [0], [1], [0, 0, 1, 1], [], []>} : vector<8x128xf32>, vector<128x128xf32>, vector<8x128xf32> -> vector<8x128xf32>
    %36 = vector.shape_cast %35 : vector<8x128xf32> to vector<1x8x128xf32>
    %37 = arith.mulf %36, %36 : vector<1x8x128xf32>
    %38 = tpu.concatenate %36, %37 in 2 : vector<1x8x128xf32>, vector<1x8x128xf32> -> vector<1x8x256xf32>
    %cst_14 = arith.constant dense<0.000000e+00> : vector<1x256xf32>
    %39 = vector.multi_reduction <add>, %38, %cst_14 [1] : vector<1x8x256xf32> to vector<1x256xf32>
    %40 = vector.shape_cast %39 : vector<1x256xf32> to vector<1x1x256xf32>
    %cst_15 = arith.constant 1.250000e-01 : f32
    %41 = vector.broadcast %cst_15 : f32 to vector<1x1x256xf32>
    %42 = arith.mulf %40, %41 : vector<1x1x256xf32>
    %43 = vector.extract_strided_slice %42 {offsets = [0, 0, 0], sizes = [1, 1, 128], strides = [1, 1, 1]} : vector<1x1x256xf32> to vector<1x1x128xf32>
    %44 = vector.extract_strided_slice %42 {offsets = [0, 0, 128], sizes = [1, 1, 128], strides = [1, 1, 1]} : vector<1x1x256xf32> to vector<1x1x128xf32>
    %45 = arith.mulf %43, %43 : vector<1x1x128xf32>
    %46 = arith.subf %44, %45 : vector<1x1x128xf32>
    %47 = vector.shape_cast %32 : vector<1x128xf32> to vector<1x1x128xf32>
    %cst_16 = arith.constant 9.99999974E-6 : f32
    %48 = vector.broadcast %cst_16 : f32 to vector<1x1x128xf32>
    %49 = arith.addf %46, %48 : vector<1x1x128xf32>
    %50 = math.rsqrt %49 : vector<1x1x128xf32>
    %51 = arith.mulf %47, %50 : vector<1x1x128xf32>
    %52 = vector.shape_cast %33 : vector<1x128xf32> to vector<1x1x128xf32>
    %53 = arith.mulf %43, %51 : vector<1x1x128xf32>
    %54 = arith.subf %52, %53 : vector<1x1x128xf32>
    %55 = vector.broadcast %51 : vector<1x1x128xf32> to vector<1x8x128xf32>
    %56 = arith.mulf %36, %55 : vector<1x8x128xf32>
    %57 = vector.broadcast %54 : vector<1x1x128xf32> to vector<1x8x128xf32>
    %58 = arith.addf %56, %57 : vector<1x8x128xf32>
    %cst_17 = arith.constant 0.000000e+00 : f32
    %59 = vector.broadcast %cst_17 : f32 to vector<1x8x128xf32>
    %60 = arith.maximumf %58, %59 : vector<1x8x128xf32>
    %c256 = arith.constant 256 : index
    %c0_18 = arith.constant 0 : index
    %61 = vector.load %arg2[%c256, %c0_18] : memref<520x128xf32, #tpu.memory_space<vmem>>, vector<128x128xf32>
    %c516 = arith.constant 516 : index
    %c0_19 = arith.constant 0 : index
    %62 = vector.load %arg2[%c516, %c0_19] : memref<520x128xf32, #tpu.memory_space<vmem>>, vector<1x128xf32>
    %c517 = arith.constant 517 : index
    %c0_20 = arith.constant 0 : index
    %63 = vector.load %arg2[%c517, %c0_20] : memref<520x128xf32, #tpu.memory_space<vmem>>, vector<1x128xf32>
    %64 = vector.shape_cast %60 : vector<1x8x128xf32> to vector<8x128xf32>
    %cst_21 = arith.constant dense<0.000000e+00> : vector<8x128xf32>
    %65 = tpu.matmul %64, %61, %cst_21 {dimension_numbers = #tpu.dot_dimension_numbers<[1], [0], [0], [1], [0, 0, 1, 1], [], []>} : vector<8x128xf32>, vector<128x128xf32>, vector<8x128xf32> -> vector<8x128xf32>
    %66 = vector.shape_cast %65 : vector<8x128xf32> to vector<1x8x128xf32>
    %67 = arith.mulf %66, %66 : vector<1x8x128xf32>
    %68 = tpu.concatenate %66, %67 in 2 : vector<1x8x128xf32>, vector<1x8x128xf32> -> vector<1x8x256xf32>
    %cst_22 = arith.constant dense<0.000000e+00> : vector<1x256xf32>
    %69 = vector.multi_reduction <add>, %68, %cst_22 [1] : vector<1x8x256xf32> to vector<1x256xf32>
    %70 = vector.shape_cast %69 : vector<1x256xf32> to vector<1x1x256xf32>
    %cst_23 = arith.constant 1.250000e-01 : f32
    %71 = vector.broadcast %cst_23 : f32 to vector<1x1x256xf32>
    %72 = arith.mulf %70, %71 : vector<1x1x256xf32>
    %73 = vector.extract_strided_slice %72 {offsets = [0, 0, 0], sizes = [1, 1, 128], strides = [1, 1, 1]} : vector<1x1x256xf32> to vector<1x1x128xf32>
    %74 = vector.extract_strided_slice %72 {offsets = [0, 0, 128], sizes = [1, 1, 128], strides = [1, 1, 1]} : vector<1x1x256xf32> to vector<1x1x128xf32>
    %75 = arith.mulf %73, %73 : vector<1x1x128xf32>
    %76 = arith.subf %74, %75 : vector<1x1x128xf32>
    %77 = vector.shape_cast %62 : vector<1x128xf32> to vector<1x1x128xf32>
    %cst_24 = arith.constant 9.99999974E-6 : f32
    %78 = vector.broadcast %cst_24 : f32 to vector<1x1x128xf32>
    %79 = arith.addf %76, %78 : vector<1x1x128xf32>
    %80 = math.rsqrt %79 : vector<1x1x128xf32>
    %81 = arith.mulf %77, %80 : vector<1x1x128xf32>
    %82 = vector.shape_cast %63 : vector<1x128xf32> to vector<1x1x128xf32>
    %83 = arith.mulf %73, %81 : vector<1x1x128xf32>
    %84 = arith.subf %82, %83 : vector<1x1x128xf32>
    %85 = vector.broadcast %81 : vector<1x1x128xf32> to vector<1x8x128xf32>
    %86 = arith.mulf %66, %85 : vector<1x8x128xf32>
    %87 = vector.broadcast %84 : vector<1x1x128xf32> to vector<1x8x128xf32>
    %88 = arith.addf %86, %87 : vector<1x8x128xf32>
    %cst_25 = arith.constant 0.000000e+00 : f32
    %89 = vector.broadcast %cst_25 : f32 to vector<1x8x128xf32>
    %90 = arith.maximumf %88, %89 : vector<1x8x128xf32>
    %c384 = arith.constant 384 : index
    %c0_26 = arith.constant 0 : index
    %91 = vector.load %arg2[%c384, %c0_26] : memref<520x128xf32, #tpu.memory_space<vmem>>, vector<128x128xf32>
    %c518 = arith.constant 518 : index
    %c0_27 = arith.constant 0 : index
    %92 = vector.load %arg2[%c518, %c0_27] : memref<520x128xf32, #tpu.memory_space<vmem>>, vector<1x128xf32>
    %c519 = arith.constant 519 : index
    %c0_28 = arith.constant 0 : index
    %93 = vector.load %arg2[%c519, %c0_28] : memref<520x128xf32, #tpu.memory_space<vmem>>, vector<1x128xf32>
    %94 = vector.shape_cast %90 : vector<1x8x128xf32> to vector<8x128xf32>
    %cst_29 = arith.constant dense<0.000000e+00> : vector<8x128xf32>
    %95 = tpu.matmul %94, %91, %cst_29 {dimension_numbers = #tpu.dot_dimension_numbers<[1], [0], [0], [1], [0, 0, 1, 1], [], []>} : vector<8x128xf32>, vector<128x128xf32>, vector<8x128xf32> -> vector<8x128xf32>
    %96 = vector.shape_cast %95 : vector<8x128xf32> to vector<1x8x128xf32>
    %97 = arith.mulf %96, %96 : vector<1x8x128xf32>
    %98 = tpu.concatenate %96, %97 in 2 : vector<1x8x128xf32>, vector<1x8x128xf32> -> vector<1x8x256xf32>
    %cst_30 = arith.constant dense<0.000000e+00> : vector<1x256xf32>
    %99 = vector.multi_reduction <add>, %98, %cst_30 [1] : vector<1x8x256xf32> to vector<1x256xf32>
    %100 = vector.shape_cast %99 : vector<1x256xf32> to vector<1x1x256xf32>
    %cst_31 = arith.constant 1.250000e-01 : f32
    %101 = vector.broadcast %cst_31 : f32 to vector<1x1x256xf32>
    %102 = arith.mulf %100, %101 : vector<1x1x256xf32>
    %103 = vector.extract_strided_slice %102 {offsets = [0, 0, 0], sizes = [1, 1, 128], strides = [1, 1, 1]} : vector<1x1x256xf32> to vector<1x1x128xf32>
    %104 = vector.extract_strided_slice %102 {offsets = [0, 0, 128], sizes = [1, 1, 128], strides = [1, 1, 1]} : vector<1x1x256xf32> to vector<1x1x128xf32>
    %105 = arith.mulf %103, %103 : vector<1x1x128xf32>
    %106 = arith.subf %104, %105 : vector<1x1x128xf32>
    %107 = vector.shape_cast %92 : vector<1x128xf32> to vector<1x1x128xf32>
    %cst_32 = arith.constant 9.99999974E-6 : f32
    %108 = vector.broadcast %cst_32 : f32 to vector<1x1x128xf32>
    %109 = arith.addf %106, %108 : vector<1x1x128xf32>
    %110 = math.rsqrt %109 : vector<1x1x128xf32>
    %111 = arith.mulf %107, %110 : vector<1x1x128xf32>
    %112 = vector.shape_cast %93 : vector<1x128xf32> to vector<1x1x128xf32>
    %113 = arith.mulf %103, %111 : vector<1x1x128xf32>
    %114 = arith.subf %112, %113 : vector<1x1x128xf32>
    %115 = vector.broadcast %111 : vector<1x1x128xf32> to vector<1x8x128xf32>
    %116 = arith.mulf %96, %115 : vector<1x8x128xf32>
    %117 = vector.broadcast %114 : vector<1x1x128xf32> to vector<1x8x128xf32>
    %118 = arith.addf %116, %117 : vector<1x8x128xf32>
    %cst_33 = arith.constant 0.000000e+00 : f32
    %119 = vector.broadcast %cst_33 : f32 to vector<1x8x128xf32>
    %120 = arith.maximumf %118, %119 : vector<1x8x128xf32>
    %c0_34 = arith.constant 0 : index
    %c0_35 = arith.constant 0 : index
    %c0_36 = arith.constant 0 : index
    %121 = vector.load %arg3[%c0_34, %c0_35, %c0_36] : memref<1x8x128xf32, #tpu.memory_space<vmem>>, vector<1x8x128xf32>
    tpu.vector_store %arg3[%c0_34, %c0_35, %c0_36], %120 {strides = array<i32>} : memref<1x8x128xf32, #tpu.memory_space<vmem>>, vector<1x8x128xf32>,
    return
  }
  func.func @transform_0(%arg0: i32) -> (i32, i32, i32) {
    %c0_i32 = arith.constant 0 : i32
    %c0_i32_0 = arith.constant 0 : i32
    %c0_i32_1 = arith.constant 0 : i32
    return %arg0, %c0_i32, %c0_i32_0 : i32, i32, i32
  }
  func.func @transform_1(%arg0: i32) -> (i32, i32) {
    %c0_i32 = arith.constant 0 : i32
    %c0_i32_0 = arith.constant 0 : i32
    %c0_i32_1 = arith.constant 0 : i32
    return %c0_i32, %c0_i32_0 : i32, i32
  }
  func.func @transform_2(%arg0: i32) -> (i32, i32, i32) {
    %c0_i32 = arith.constant 0 : i32
    %c0_i32_0 = arith.constant 0 : i32
    %c0_i32_1 = arith.constant 0 : i32
    return %arg0, %c0_i32, %c0_i32_0 : i32, i32, i32
  }
}

</mosaic_0001>

<llo_original>
// kernel: tpu_custom_call.1
$region0: #{tpu_custom_call.1}
  #allocation0 [shape = 'u32[]', space=smem, size = 0x4, offset = 0x4, fixed_abs, tag = 'smem constant byte address 0x4 - core index']
  #allocation1 [shape = 'u32[144,128]{1,0:T(1,128)}', space=vmem, size = 0x12000, scoped, tag = 'internal scratch']
  %s0 = inlined_call_operand.hbm [shape: f32[1,8,128], index: 0, kind: input, shape index: {}]
  %s1 = inlined_call_operand.hbm [shape: f32[520,128], index: 1, kind: input, shape index: {}]
  %s2 = inlined_call_operand.hbm [shape: f32[1,8,128], index: 2, kind: output, shape index: {}]
  %s3 = sld [smem:[#allocation0]]
  $region26: #{tpu_custom_call.1} parent=0
    _
  %s5 = ssub.s32 1, %s3
  %s6 = scalar_select 0, %s5, %s3
  $region1: #{tpu_custom_call.1} parent=0
    #allocation2 [shape = 'u8[4096]{0}', space=vmem, size = 0x1000, scoped, tag = 'input window, operand 0, single buffered']
    #allocation3 [shape = 's32[1]{0}', space=sflag, size = 0x4, scoped, tag = 'scoped memory for tpu_custom_call.1']
    #allocation4 [shape = 's32[1]{0}', space=sflag, size = 0x4, scoped, tag = 'scoped memory for tpu_custom_call.1']
    #allocation5 [shape = 'u8[266240]{0}', space=vmem, size = 0x41000, scoped, tag = 'input window, operand 1, single buffered']
    #allocation6 [shape = 's32[1]{0}', space=sflag, size = 0x4, scoped, tag = 'scoped memory for tpu_custom_call.1']
    #allocation7 [shape = 'u8[4096]{0}', space=vmem, size = 0x1000, scoped, tag = 'output window, operand 0, single buffered']
    %7 = vsyncpa [#allocation3], 0
    %8 = vsyncpa [#allocation6], 0
    %9 = vsyncpa [#allocation4], 0
    // Predicated region
    $region2: #{tpu_custom_call.1} parent=1 // pred_check
      _
    $region3: #{tpu_custom_call.1} parent=1 // pred_check_branch
      %11 = sbr.rel (0) target = $region5
    $region4: #{tpu_custom_call.1} parent=1 // pred_region
      %s13 = ssub.s32 128, 128
      %14 = vsyncadd [#allocation3], %s13
      %s16 = sshll.u32 [#allocation2], 4
      %s17 = int_to_ptr.vmem [resolvable:$true] %s16
      %19 = dma.hbm_to_vmem [thread:$0]  %s0, 128, %s17, [#allocation3]
    $region5: #{tpu_custom_call.1} parent=1 // pred_fallthru
      _
    // Predicated region
    $region6: #{tpu_custom_call.1} parent=1 // pred_check
      _
    $region7: #{tpu_custom_call.1} parent=1 // pred_check_branch
      %21 = sbr.rel (0) target = $region9
    $region8: #{tpu_custom_call.1} parent=1 // pred_region
      %s23 = ssub.s32 8320, 8320
      %24 = vsyncadd [#allocation6], %s23
      %s25 = sshll.u32 [#allocation5], 4
      %s26 = int_to_ptr.vmem [resolvable:$true] %s25
      %31 = dma.hbm_to_vmem [thread:$0]  %s1, 8320, %s26, [#allocation6], 128, 128, 8
    $region9: #{tpu_custom_call.1} parent=1 // pred_fallthru
      _
    // Predicated region
    $region10: #{tpu_custom_call.1} parent=1 // pred_check
      _
    $region11: #{tpu_custom_call.1} parent=1 // pred_check_branch
      %33 = sbr.rel (0) target = $region13
    $region12: #{tpu_custom_call.1} parent=1 // pred_region
      %34 = dma.done [#allocation3], 128
    $region13: #{tpu_custom_call.1} parent=1 // pred_fallthru
      _
    // Predicated region
    $region14: #{tpu_custom_call.1} parent=1 // pred_check
      _
    $region15: #{tpu_custom_call.1} parent=1 // pred_check_branch
      %36 = sbr.rel (0) target = $region17
    $region16: #{tpu_custom_call.1} parent=1 // pred_region
      %37 = dma.done [#allocation6], 8320
    $region17: #{tpu_custom_call.1} parent=1 // pred_fallthru
      _
    %v38 = vld [vmem:[#allocation2] sm:$0xff]
    %v39 = vld [vmem:[#allocation5] sm:$0xff]
    %v40 = vld [vmem:[#allocation5 + $0x8] sm:$0xff]
    %v41 = vld [vmem:[#allocation5 + $0x10] sm:$0xff]
    %v42 = vld [vmem:[#allocation5 + $0x18] sm:$0xff]
    %v43 = vld [vmem:[#allocation5 + $0x20] sm:$0xff]
    %v44 = vld [vmem:[#allocation5 + $0x28] sm:$0xff]
    %v45 = vld [vmem:[#allocation5 + $0x30] sm:$0xff]
    %v46 = vld [vmem:[#allocation5 + $0x38] sm:$0xff]
    %v47 = vld [vmem:[#allocation5 + $0x40] sm:$0xff]
    %v48 = vld [vmem:[#allocation5 + $0x48] sm:$0xff]
    %v49 = vld [vmem:[#allocation5 + $0x50] sm:$0xff]
    %v50 = vld [vmem:[#allocation5 + $0x58] sm:$0xff]
    %v51 = vld [vmem:[#allocation5 + $0x60] sm:$0xff]
    %v52 = vld [vmem:[#allocation5 + $0x68] sm:$0xff]
    %v53 = vld [vmem:[#allocation5 + $0x70] sm:$0xff]
    %v54 = vld [vmem:[#allocation5 + $0x78] sm:$0xff]
    %v55 = vld [vmem:[#allocation5 + $0x200] sm:$0x1]
    %v56 = vld [vmem:[#allocation5 + $0x201] sm:$0x1]
    %57 = vmatprep.subr.mxu0 0.0
    %58 = vmatpush1.msra.mxu0 %v54
    %59 = vmatprep.subr.mxu0 0.0
    %60 = vmatpush1.msra.mxu0 %v53
    %61 = vmatprep.subr.mxu0 0.0
    %62 = vmatpush1.msra.mxu0 %v52
    %63 = vmatprep.subr.mxu0 0.0
    %64 = vmatpush1.msra.mxu0 %v51
    %65 = vmatprep.subr.mxu0 0.0
    %66 = vmatpush1.msra.mxu0 %v50
    %67 = vmatprep.subr.mxu0 0.0
    %68 = vmatpush1.msra.mxu0 %v49
    %69 = vmatprep.subr.mxu0 0.0
    %70 = vmatpush1.msra.mxu0 %v48
    %71 = vmatprep.subr.mxu0 0.0
    %72 = vmatpush1.msra.mxu0 %v47
    %73 = vmatprep.subr.mxu0 0.0
    %74 = vmatpush1.msra.mxu0 %v46
    %75 = vmatprep.subr.mxu0 0.0
    %76 = vmatpush1.msra.mxu0 %v45
    %77 = vmatprep.subr.mxu0 0.0
    %78 = vmatpush1.msra.mxu0 %v44
    %79 = vmatprep.subr.mxu0 0.0
    %80 = vmatpush1.msra.mxu0 %v43
    %81 = vmatprep.subr.mxu0 0.0
    %82 = vmatpush1.msra.mxu0 %v42
    %83 = vmatprep.subr.mxu0 0.0
    %84 = vmatpush1.msra.mxu0 %v41
    %85 = vmatprep.subr.mxu0 0.0
    %86 = vmatpush1.msra.mxu0 %v40
    %87 = vmatprep.subr.mxu0 0.0
    %88 = vmatpush1.msra.mxu0 %v39
    %89 = vmatprep.subr.mxu0 0.0
    %90 = vmatpush2.msra.mxu0 0.0
    %91 = vmatprep.subr.mxu0 0.0
    %92 = vmatpush2.msra.mxu0 0.0
    %93 = vmatprep.subr.mxu0 0.0
    %94 = vmatpush2.msra.mxu0 0.0
    %95 = vmatprep.subr.mxu0 0.0
    %96 = vmatpush2.msra.mxu0 0.0
    %97 = vmatprep.subr.mxu0 0.0
    %98 = vmatpush2.msra.mxu0 0.0
    %99 = vmatprep.subr.mxu0 0.0
    %100 = vmatpush2.msra.mxu0 0.0
    %101 = vmatprep.subr.mxu0 0.0
    %102 = vmatpush2.msra.mxu0 0.0
    %103 = vmatprep.subr.mxu0 0.0
    %104 = vmatpush2.msra.mxu0 0.0
    %105 = vmatprep.subr.mxu0 0.0
    %106 = vmatpush2.msra.mxu0 0.0
    %107 = vmatprep.subr.mxu0 0.0
    %108 = vmatpush2.msra.mxu0 0.0
    %109 = vmatprep.subr.mxu0 0.0
    %110 = vmatpush2.msra.mxu0 0.0
    %111 = vmatprep.subr.mxu0 0.0
    %112 = vmatpush2.msra.mxu0 0.0
    %113 = vmatprep.subr.mxu0 0.0
    %114 = vmatpush2.msra.mxu0 0.0
    %115 = vmatprep.subr.mxu0 0.0
    %116 = vmatpush2.msra.mxu0 0.0
    %117 = vmatprep.subr.mxu0 0.0
    %118 = vmatpush2.msra.mxu0 0.0
    %119 = vmatprep.subr.mxu0 0.0
    %120 = vmatpush2.msra.mxu0 0.0
    %121 = vmatprep.mubr.f32.mxu0 0.0
    %122 = vmatmul.mubr.f32.gmra.mxu0 %v38
    %v123 = vpop.f32.mrf.mxu0
    %v124 = vadd.f32 0.0, %v123
    %v125 = vpop.f32.mrf.mxu0
    %126 = vdwg.mxu0
    %v127 = vmul.f32 %v124, %v124
    %v128 = vrot.slane %v124, 4
    %v129 = vadd.f32 %v124, %v128
    %v130 = vrot.slane %v129, 2
    %v131 = vadd.f32 %v129, %v130
    %v132 = vrot.slane %v131, 1
    %v133 = vadd.f32 %v131, %v132
    %v134 = vrot.slane %v127, 4
    %v135 = vadd.f32 %v127, %v134
    %v136 = vrot.slane %v135, 2
    %v137 = vadd.f32 %v135, %v136
    %v138 = vrot.slane %v137, 1
    %v139 = vadd.f32 %v137, %v138
    %v140 = vmul.f32 %v133, 0.125
    %v141 = vmul.f32 %v139, 0.125
    %v142 = vmul.f32 %v140, %v140
    %v143 = vsub.f32 %v141, %v142
    %v144 = vadd.f32 %v143, 1e-05
    %v145 = vrsqrt.pop %v144
    %v146 = vmul.f32 %v55, %v145
    %v147 = vmul.f32 %v140, %v146
    %v148 = vsub.f32 %v56, %v147
    %v149 = vlaneseq
    %v150 = vshrl.u32 %v149, 7
    %v151 = vsub.s32 0, %v150
    %v152 = vrot.slane %v146, %v151
    %v153 = vmul.f32 %v124, %v152
    %v154 = vlaneseq
    %v155 = vshrl.u32 %v154, 7
    %v156 = vsub.s32 0, %v155
    %v157 = vrot.slane %v148, %v156
    %v158 = vadd.f32 %v153, %v157
    %v159 = vmax.f32 %v158, 0.0
    %v160 = vld [vmem:[#allocation5 + $0x80] sm:$0xff]
    %v161 = vld [vmem:[#allocation5 + $0x88] sm:$0xff]
    %v162 = vld [vmem:[#allocation5 + $0x90] sm:$0xff]
    %v163 = vld [vmem:[#allocation5 + $0x98] sm:$0xff]
    %v164 = vld [vmem:[#allocation5 + $0xa0] sm:$0xff]
    %v165 = vld [vmem:[#allocation5 + $0xa8] sm:$0xff]
    %v166 = vld [vmem:[#allocation5 + $0xb0] sm:$0xff]
    %v167 = vld [vmem:[#allocation5 + $0xb8] sm:$0xff]
    %v168 = vld [vmem:[#allocation5 + $0xc0] sm:$0xff]
    %v169 = vld [vmem:[#allocation5 + $0xc8] sm:$0xff]
    %v170 = vld [vmem:[#allocation5 + $0xd0] sm:$0xff]
    %v171 = vld [vmem:[#allocation5 + $0xd8] sm:$0xff]
    %v172 = vld [vmem:[#allocation5 + $0xe0] sm:$0xff]
    %v173 = vld [vmem:[#allocation5 + $0xe8] sm:$0xff]
    %v174 = vld [vmem:[#allocation5 + $0xf0] sm:$0xff]
    %v175 = vld [vmem:[#allocation5 + $0xf8] sm:$0xff]
    %v176 = vld [vmem:[#allocation5 + $0x202] sm:$0x1]
    %v177 = vld [vmem:[#allocation5 + $0x203] sm:$0x1]
    %178 = vmatprep.subr.mxu0 0.0
    %179 = vmatpush1.msra.mxu0 %v175
    %180 = vmatprep.subr.mxu0 0.0
    %181 = vmatpush1.msra.mxu0 %v174
    %182 = vmatprep.subr.mxu0 0.0
    %183 = vmatpush1.msra.mxu0 %v173
    %184 = vmatprep.subr.mxu0 0.0
    %185 = vmatpush1.msra.mxu0 %v172
    %186 = vmatprep.subr.mxu0 0.0
    %187 = vmatpush1.msra.mxu0 %v171
    %188 = vmatprep.subr.mxu0 0.0
    %189 = vmatpush1.msra.mxu0 %v170
    %190 = vmatprep.subr.mxu0 0.0
    %191 = vmatpush1.msra.mxu0 %v169
    %192 = vmatprep.subr.mxu0 0.0
    %193 = vmatpush1.msra.mxu0 %v168
    %194 = vmatprep.subr.mxu0 0.0
    %195 = vmatpush1.msra.mxu0 %v167
    %196 = vmatprep.subr.mxu0 0.0
    %197 = vmatpush1.msra.mxu0 %v166
    %198 = vmatprep.subr.mxu0 0.0
    %199 = vmatpush1.msra.mxu0 %v165
    %200 = vmatprep.subr.mxu0 0.0
    %201 = vmatpush1.msra.mxu0 %v164
    %202 = vmatprep.subr.mxu0 0.0
    %203 = vmatpush1.msra.mxu0 %v163
    %204 = vmatprep.subr.mxu0 0.0
    %205 = vmatpush1.msra.mxu0 %v162
    %206 = vmatprep.subr.mxu0 0.0
    %207 = vmatpush1.msra.mxu0 %v161
    %208 = vmatprep.subr.mxu0 0.0
    %209 = vmatpush1.msra.mxu0 %v160
    %210 = vmatprep.subr.mxu0 0.0
    %211 = vmatpush2.msra.mxu0 0.0
    %212 = vmatprep.subr.mxu0 0.0
    %213 = vmatpush2.msra.mxu0 0.0
    %214 = vmatprep.subr.mxu0 0.0
    %215 = vmatpush2.msra.mxu0 0.0
    %216 = vmatprep.subr.mxu0 0.0
    %217 = vmatpush2.msra.mxu0 0.0
    %218 = vmatprep.subr.mxu0 0.0
    %219 = vmatpush2.msra.mxu0 0.0
    %220 = vmatprep.subr.mxu0 0.0
    %221 = vmatpush2.msra.mxu0 0.0
    %222 = vmatprep.subr.mxu0 0.0
    %223 = vmatpush2.msra.mxu0 0.0
    %224 = vmatprep.subr.mxu0 0.0
    %225 = vmatpush2.msra.mxu0 0.0
    %226 = vmatprep.subr.mxu0 0.0
    %227 = vmatpush2.msra.mxu0 0.0
    %228 = vmatprep.subr.mxu0 0.0
    %229 = vmatpush2.msra.mxu0 0.0
    %230 = vmatprep.subr.mxu0 0.0
    %231 = vmatpush2.msra.mxu0 0.0
    %232 = vmatprep.subr.mxu0 0.0
    %233 = vmatpush2.msra.mxu0 0.0
    %234 = vmatprep.subr.mxu0 0.0
    %235 = vmatpush2.msra.mxu0 0.0
    %236 = vmatprep.subr.mxu0 0.0
    %237 = vmatpush2.msra.mxu0 0.0
    %238 = vmatprep.subr.mxu0 0.0
    %239 = vmatpush2.msra.mxu0 0.0
    %240 = vmatprep.subr.mxu0 0.0
    %241 = vmatpush2.msra.mxu0 0.0
    %242 = vmatprep.mubr.f32.mxu0 0.0
    %243 = vmatmul.mubr.f32.gmra.mxu0 %v159
    %v244 = vpop.f32.mrf.mxu0
    %v245 = vadd.f32 0.0, %v244
    %v246 = vpop.f32.mrf.mxu0
    %247 = vdwg.mxu0
    %v248 = vmul.f32 %v245, %v245
    %v249 = vrot.slane %v245, 4
    %v250 = vadd.f32 %v245, %v249
    %v251 = vrot.slane %v250, 2
    %v252 = vadd.f32 %v250, %v251
    %v253 = vrot.slane %v252, 1
    %v254 = vadd.f32 %v252, %v253
    %v255 = vrot.slane %v248, 4
    %v256 = vadd.f32 %v248, %v255
    %v257 = vrot.slane %v256, 2
    %v258 = vadd.f32 %v256, %v257
    %v259 = vrot.slane %v258, 1
    %v260 = vadd.f32 %v258, %v259
    %v261 = vmul.f32 %v254, 0.125
    %v262 = vmul.f32 %v260, 0.125
    %v263 = vmul.f32 %v261, %v261
    %v264 = vsub.f32 %v262, %v263
    %v265 = vadd.f32 %v264, 1e-05
    %v266 = vrsqrt.pop %v265
    %v267 = vmul.f32 %v176, %v266
    %v268 = vmul.f32 %v261, %v267
    %v269 = vsub.f32 %v177, %v268
    %v270 = vlaneseq
    %v271 = vshrl.u32 %v270, 7
    %v272 = vsub.s32 0, %v271
    %v273 = vrot.slane %v267, %v272
    %v274 = vmul.f32 %v245, %v273
    %v275 = vlaneseq
    %v276 = vshrl.u32 %v275, 7
    %v277 = vsub.s32 0, %v276
    %v278 = vrot.slane %v269, %v277
    %v279 = vadd.f32 %v274, %v278
    %v280 = vmax.f32 %v279, 0.0
    %v281 = vld [vmem:[#allocation5 + $0x100] sm:$0xff]
    %v282 = vld [vmem:[#allocation5 + $0x108] sm:$0xff]
    %v283 = vld [vmem:[#allocation5 + $0x110] sm:$0xff]
    %v284 = vld [vmem:[#allocation5 + $0x118] sm:$0xff]
    %v285 = vld [vmem:[#allocation5 + $0x120] sm:$0xff]
    %v286 = vld [vmem:[#allocation5 + $0x128] sm:$0xff]
    %v287 = vld [vmem:[#allocation5 + $0x130] sm:$0xff]
    %v288 = vld [vmem:[#allocation5 + $0x138] sm:$0xff]
    %v289 = vld [vmem:[#allocation5 + $0x140] sm:$0xff]
    %v290 = vld [vmem:[#allocation5 + $0x148] sm:$0xff]
    %v291 = vld [vmem:[#allocation5 + $0x150] sm:$0xff]
    %v292 = vld [vmem:[#allocation5 + $0x158] sm:$0xff]
    %v293 = vld [vmem:[#allocation5 + $0x160] sm:$0xff]
    %v294 = vld [vmem:[#allocation5 + $0x168] sm:$0xff]
    %v295 = vld [vmem:[#allocation5 + $0x170] sm:$0xff]
    %v296 = vld [vmem:[#allocation5 + $0x178] sm:$0xff]
    %v297 = vld [vmem:[#allocation5 + $0x204] sm:$0x1]
    %v298 = vld [vmem:[#allocation5 + $0x205] sm:$0x1]
    %299 = vmatprep.subr.mxu0 0.0
    %300 = vmatpush1.msra.mxu0 %v296
    %301 = vmatprep.subr.mxu0 0.0
    %302 = vmatpush1.msra.mxu0 %v295
    %303 = vmatprep.subr.mxu0 0.0
    %304 = vmatpush1.msra.mxu0 %v294
    %305 = vmatprep.subr.mxu0 0.0
    %306 = vmatpush1.msra.mxu0 %v293
    %307 = vmatprep.subr.mxu0 0.0
    %308 = vmatpush1.msra.mxu0 %v292
    %309 = vmatprep.subr.mxu0 0.0
    %310 = vmatpush1.msra.mxu0 %v291
    %311 = vmatprep.subr.mxu0 0.0
    %312 = vmatpush1.msra.mxu0 %v290
    %313 = vmatprep.subr.mxu0 0.0
    %314 = vmatpush1.msra.mxu0 %v289
    %315 = vmatprep.subr.mxu0 0.0
    %316 = vmatpush1.msra.mxu0 %v288
    %317 = vmatprep.subr.mxu0 0.0
    %318 = vmatpush1.msra.mxu0 %v287
    %319 = vmatprep.subr.mxu0 0.0
    %320 = vmatpush1.msra.mxu0 %v286
    %321 = vmatprep.subr.mxu0 0.0
    %322 = vmatpush1.msra.mxu0 %v285
    %323 = vmatprep.subr.mxu0 0.0
    %324 = vmatpush1.msra.mxu0 %v284
    %325 = vmatprep.subr.mxu0 0.0
    %326 = vmatpush1.msra.mxu0 %v283
    %327 = vmatprep.subr.mxu0 0.0
    %328 = vmatpush1.msra.mxu0 %v282
    %329 = vmatprep.subr.mxu0 0.0
    %330 = vmatpush1.msra.mxu0 %v281
    %331 = vmatprep.subr.mxu0 0.0
    %332 = vmatpush2.msra.mxu0 0.0
    %333 = vmatprep.subr.mxu0 0.0
    %334 = vmatpush2.msra.mxu0 0.0
    %335 = vmatprep.subr.mxu0 0.0
    %336 = vmatpush2.msra.mxu0 0.0
    %337 = vmatprep.subr.mxu0 0.0
    %338 = vmatpush2.msra.mxu0 0.0
    %339 = vmatprep.subr.mxu0 0.0
    %340 = vmatpush2.msra.mxu0 0.0
    %341 = vmatprep.subr.mxu0 0.0
    %342 = vmatpush2.msra.mxu0 0.0
    %343 = vmatprep.subr.mxu0 0.0
    %344 = vmatpush2.msra.mxu0 0.0
    %345 = vmatprep.subr.mxu0 0.0
    %346 = vmatpush2.msra.mxu0 0.0
    %347 = vmatprep.subr.mxu0 0.0
    %348 = vmatpush2.msra.mxu0 0.0
    %349 = vmatprep.subr.mxu0 0.0
    %350 = vmatpush2.msra.mxu0 0.0
    %351 = vmatprep.subr.mxu0 0.0
    %352 = vmatpush2.msra.mxu0 0.0
    %353 = vmatprep.subr.mxu0 0.0
    %354 = vmatpush2.msra.mxu0 0.0
    %355 = vmatprep.subr.mxu0 0.0
    %356 = vmatpush2.msra.mxu0 0.0
    %357 = vmatprep.subr.mxu0 0.0
    %358 = vmatpush2.msra.mxu0 0.0
    %359 = vmatprep.subr.mxu0 0.0
    %360 = vmatpush2.msra.mxu0 0.0
    %361 = vmatprep.subr.mxu0 0.0
    %362 = vmatpush2.msra.mxu0 0.0
    %363 = vmatprep.mubr.f32.mxu0 0.0
    %364 = vmatmul.mubr.f32.gmra.mxu0 %v280
    %v365 = vpop.f32.mrf.mxu0
    %v366 = vadd.f32 0.0, %v365
    %v367 = vpop.f32.mrf.mxu0
    %368 = vdwg.mxu0
    %v369 = vmul.f32 %v366, %v366
    %v370 = vrot.slane %v366, 4
    %v371 = vadd.f32 %v366, %v370
    %v372 = vrot.slane %v371, 2
    %v373 = vadd.f32 %v371, %v372
    %v374 = vrot.slane %v373, 1
    %v375 = vadd.f32 %v373, %v374
    %v376 = vrot.slane %v369, 4
    %v377 = vadd.f32 %v369, %v376
    %v378 = vrot.slane %v377, 2
    %v379 = vadd.f32 %v377, %v378
    %v380 = vrot.slane %v379, 1
    %v381 = vadd.f32 %v379, %v380
    %v382 = vmul.f32 %v375, 0.125
    %v383 = vmul.f32 %v381, 0.125
    %v384 = vmul.f32 %v382, %v382
    %v385 = vsub.f32 %v383, %v384
    %v386 = vadd.f32 %v385, 1e-05
    %v387 = vrsqrt.pop %v386
    %v388 = vmul.f32 %v297, %v387
    %v389 = vmul.f32 %v382, %v388
    %v390 = vsub.f32 %v298, %v389
    %v391 = vlaneseq
    %v392 = vshrl.u32 %v391, 7
    %v393 = vsub.s32 0, %v392
    %v394 = vrot.slane %v388, %v393
    %v395 = vmul.f32 %v366, %v394
    %v396 = vlaneseq
    %v397 = vshrl.u32 %v396, 7
    %v398 = vsub.s32 0, %v397
    %v399 = vrot.slane %v390, %v398
    %v400 = vadd.f32 %v395, %v399
    %v401 = vmax.f32 %v400, 0.0
    %v402 = vld [vmem:[#allocation5 + $0x180] sm:$0xff]
    %v403 = vld [vmem:[#allocation5 + $0x188] sm:$0xff]
    %v404 = vld [vmem:[#allocation5 + $0x190] sm:$0xff]
    %v405 = vld [vmem:[#allocation5 + $0x198] sm:$0xff]
    %v406 = vld [vmem:[#allocation5 + $0x1a0] sm:$0xff]
    %v407 = vld [vmem:[#allocation5 + $0x1a8] sm:$0xff]
    %v408 = vld [vmem:[#allocation5 + $0x1b0] sm:$0xff]
    %v409 = vld [vmem:[#allocation5 + $0x1b8] sm:$0xff]
    %v410 = vld [vmem:[#allocation5 + $0x1c0] sm:$0xff]
    %v411 = vld [vmem:[#allocation5 + $0x1c8] sm:$0xff]
    %v412 = vld [vmem:[#allocation5 + $0x1d0] sm:$0xff]
    %v413 = vld [vmem:[#allocation5 + $0x1d8] sm:$0xff]
    %v414 = vld [vmem:[#allocation5 + $0x1e0] sm:$0xff]
    %v415 = vld [vmem:[#allocation5 + $0x1e8] sm:$0xff]
    %v416 = vld [vmem:[#allocation5 + $0x1f0] sm:$0xff]
    %v417 = vld [vmem:[#allocation5 + $0x1f8] sm:$0xff]
    %v418 = vld [vmem:[#allocation5 + $0x206] sm:$0x1]
    %v419 = vld [vmem:[#allocation5 + $0x207] sm:$0x1]
    %420 = vmatprep.subr.mxu0 0.0
    %421 = vmatpush1.msra.mxu0 %v417
    %422 = vmatprep.subr.mxu0 0.0
    %423 = vmatpush1.msra.mxu0 %v416
    %424 = vmatprep.subr.mxu0 0.0
    %425 = vmatpush1.msra.mxu0 %v415
    %426 = vmatprep.subr.mxu0 0.0
    %427 = vmatpush1.msra.mxu0 %v414
    %428 = vmatprep.subr.mxu0 0.0
    %429 = vmatpush1.msra.mxu0 %v413
    %430 = vmatprep.subr.mxu0 0.0
    %431 = vmatpush1.msra.mxu0 %v412
    %432 = vmatprep.subr.mxu0 0.0
    %433 = vmatpush1.msra.mxu0 %v411
    %434 = vmatprep.subr.mxu0 0.0
    %435 = vmatpush1.msra.mxu0 %v410
    %436 = vmatprep.subr.mxu0 0.0
    %437 = vmatpush1.msra.mxu0 %v409
    %438 = vmatprep.subr.mxu0 0.0
    %439 = vmatpush1.msra.mxu0 %v408
    %440 = vmatprep.subr.mxu0 0.0
    %441 = vmatpush1.msra.mxu0 %v407
    %442 = vmatprep.subr.mxu0 0.0
    %443 = vmatpush1.msra.mxu0 %v406
    %444 = vmatprep.subr.mxu0 0.0
    %445 = vmatpush1.msra.mxu0 %v405
    %446 = vmatprep.subr.mxu0 0.0
    %447 = vmatpush1.msra.mxu0 %v404
    %448 = vmatprep.subr.mxu0 0.0
    %449 = vmatpush1.msra.mxu0 %v403
    %450 = vmatprep.subr.mxu0 0.0
    %451 = vmatpush1.msra.mxu0 %v402
    %452 = vmatprep.subr.mxu0 0.0
    %453 = vmatpush2.msra.mxu0 0.0
    %454 = vmatprep.subr.mxu0 0.0
    %455 = vmatpush2.msra.mxu0 0.0
    %456 = vmatprep.subr.mxu0 0.0
    %457 = vmatpush2.msra.mxu0 0.0
    %458 = vmatprep.subr.mxu0 0.0
    %459 = vmatpush2.msra.mxu0 0.0
    %460 = vmatprep.subr.mxu0 0.0
    %461 = vmatpush2.msra.mxu0 0.0
    %462 = vmatprep.subr.mxu0 0.0
    %463 = vmatpush2.msra.mxu0 0.0
    %464 = vmatprep.subr.mxu0 0.0
    %465 = vmatpush2.msra.mxu0 0.0
    %466 = vmatprep.subr.mxu0 0.0
    %467 = vmatpush2.msra.mxu0 0.0
    %468 = vmatprep.subr.mxu0 0.0
    %469 = vmatpush2.msra.mxu0 0.0
    %470 = vmatprep.subr.mxu0 0.0
    %471 = vmatpush2.msra.mxu0 0.0
    %472 = vmatprep.subr.mxu0 0.0
    %473 = vmatpush2.msra.mxu0 0.0
    %474 = vmatprep.subr.mxu0 0.0
    %475 = vmatpush2.msra.mxu0 0.0
    %476 = vmatprep.subr.mxu0 0.0
    %477 = vmatpush2.msra.mxu0 0.0
    %478 = vmatprep.subr.mxu0 0.0
    %479 = vmatpush2.msra.mxu0 0.0
    %480 = vmatprep.subr.mxu0 0.0
    %481 = vmatpush2.msra.mxu0 0.0
    %482 = vmatprep.subr.mxu0 0.0
    %483 = vmatpush2.msra.mxu0 0.0
    %484 = vmatprep.mubr.f32.mxu0 0.0
    %485 = vmatmul.mubr.f32.gmra.mxu0 %v401
    %v486 = vpop.f32.mrf.mxu0
    %v487 = vadd.f32 0.0, %v486
    %v488 = vpop.f32.mrf.mxu0
    %489 = vdwg.mxu0
    %v490 = vmul.f32 %v487, %v487
    %v491 = vrot.slane %v487, 4
    %v492 = vadd.f32 %v487, %v491
    %v493 = vrot.slane %v492, 2
    %v494 = vadd.f32 %v492, %v493
    %v495 = vrot.slane %v494, 1
    %v496 = vadd.f32 %v494, %v495
    %v497 = vrot.slane %v490, 4
    %v498 = vadd.f32 %v490, %v497
    %v499 = vrot.slane %v498, 2
    %v500 = vadd.f32 %v498, %v499
    %v501 = vrot.slane %v500, 1
    %v502 = vadd.f32 %v500, %v501
    %v503 = vmul.f32 %v496, 0.125
    %v504 = vmul.f32 %v502, 0.125
    %v505 = vmul.f32 %v503, %v503
    %v506 = vsub.f32 %v504, %v505
    %v507 = vadd.f32 %v506, 1e-05
    %v508 = vrsqrt.pop %v507
    %v509 = vmul.f32 %v418, %v508
    %v510 = vmul.f32 %v503, %v509
    %v511 = vsub.f32 %v419, %v510
    %v512 = vlaneseq
    %v513 = vshrl.u32 %v512, 7
    %v514 = vsub.s32 0, %v513
    %v515 = vrot.slane %v509, %v514
    %v516 = vmul.f32 %v487, %v515
    %v517 = vlaneseq
    %v518 = vshrl.u32 %v517, 7
    %v519 = vsub.s32 0, %v518
    %v520 = vrot.slane %v511, %v519
    %v521 = vadd.f32 %v516, %v520
    %v522 = vmax.f32 %v521, 0.0
    %523 = vst [vmem:[#allocation7] sm:$0xff] %v522
    // Predicated region
    $region18: #{tpu_custom_call.1} parent=1 // pred_check
      _
    $region19: #{tpu_custom_call.1} parent=1 // pred_check_branch
      %525 = sbr.rel (0) target = $region21
    $region20: #{tpu_custom_call.1} parent=1 // pred_region
      %s527 = ssub.s32 128, 128
      %528 = vsyncadd [#allocation4], %s527
      %s530 = sshll.u32 [#allocation7], 4
      %s531 = int_to_ptr.vmem [resolvable:$true] %s530
      %533 = dma.vmem_to_hbm [thread:$0]  %s531, 128, %s2, [#allocation4]
    $region21: #{tpu_custom_call.1} parent=1 // pred_fallthru
      _
    // Predicated region
    $region22: #{tpu_custom_call.1} parent=1 // pred_check
      _
    $region23: #{tpu_custom_call.1} parent=1 // pred_check_branch
      %535 = sbr.rel (0) target = $region25
    $region24: #{tpu_custom_call.1} parent=1 // pred_region
      %536 = dma.done [#allocation4], 128
    $region25: #{tpu_custom_call.1} parent=1 // pred_fallthru
      _
    %537 = vsyncpa [#allocation3], 1
    %538 = vsyncpa [#allocation6], 1
    %539 = vsyncpa [#allocation4], 1

</llo_original>
